<compile_context>
chip_gen: v5e
topology: v5e:2x2
jax: 0.10.0
libtpu: 0.0.40
codegen_flags: <defaults>
</compile_context>

<pallas_src>
import math

import jax
import jax.numpy as jnp
from jax.experimental import pallas as pl
from jax.experimental.pallas import tpu as pltpu


# ----------------------------------------------------------------------------
# Pallas kernel: whole sequence in one invocation (no grid).
# ----------------------------------------------------------------------------
def _decoder_cell_kernel(y_ref, h0_ref,
                         wx_ref, bx_ref,        # packed input-side gate params
                         wh_ref, bhn_ref,       # hidden-side weights + b_hn only
                         w1_ref, b1_ref, w2_ref,  # output head
                         out_ref, hidden_ref):
    TB, _ = y_ref.shape            # T*Bp, D_in
    Bp, H = h0_ref.shape           # Bp = batch padded to 8
    T = TB // Bp
    f32 = jnp.float32
    bf16 = jnp.bfloat16

    # ---- Hoisted input projection: ONE matmul for all time steps ----------
    # bf16 operands, f32 accumulation. b_hr / b_hz are already folded into bx.
    gx = jnp.dot(y_ref[...], wx_ref[...], preferred_element_type=f32) + bx_ref[...]

    wh = wh_ref[...]               # (H, 3H)  bf16
    bhn = bhn_ref[...]             # (1, H)   f32

    # ---- Serial recurrence: only h @ Wh + elementwise on the critical path -
    # T is small and static -> fully unrolled; every slice starts at a
    # multiple of Bp=8 sublanes, so no masked / relayout work per step.
    h = h0_ref[...]                # (Bp, H)  f32 carry
    hs = []
    for t in range(T):
        gh = jnp.dot(h.astype(bf16), wh, preferred_element_type=f32)   # (Bp, 3H)
        gxt = gx[t * Bp:(t + 1) * Bp, :]                               # aligned
        r = jax.nn.sigmoid(gxt[:, 0:H] + gh[:, 0:H])
        z = jax.nn.sigmoid(gxt[:, H:2 * H] + gh[:, H:2 * H])
        n = jnp.tanh(gxt[:, 2 * H:3 * H] + r * (gh[:, 2 * H:3 * H] + bhn))
        h = n + z * (h - n)        # == (1 - z) * n + z * h
        hs.append(h)

    hidden_ref[...] = h            # final hidden state, written once

    # ---- Hoisted output head: Linear -> ReLU -> Linear(no bias), batched ---
    hs_all = jnp.concatenate(hs, axis=0)                               # (T*Bp, H)
    o = jnp.dot(hs_all.astype(bf16), w1_ref[...],
                preferred_element_type=f32) + b1_ref[...]
    o = jnp.maximum(o, 0.0)
    out_ref[...] = jnp.dot(o.astype(bf16), w2_ref[...],
                           preferred_element_type=f32)


# ----------------------------------------------------------------------------
# Parameter packing (done ONCE, outside the per-call path)
# ----------------------------------------------------------------------------
def pack_decoder_params(params):
    H = params["w_hh"].shape[1]
    f32 = jnp.float32
    bf16 = jnp.bfloat16

    b_ih = params["b_ih"].astype(f32)
    b_hh = params["b_hh"].astype(f32)
    # Fold b_hr, b_hz into the input-side bias; only b_hn stays in the loop.
    bx = b_ih.at[:2 * H].add(b_hh[:2 * H]).reshape(1, 3 * H)
    bhn = b_hh[2 * H:].reshape(1, H)

    return {
        "wx": params["w_ih"].T.astype(bf16),                   # (D_in, 3H)
        "wh": params["w_hh"].T.astype(bf16),                   # (H, 3H)
        "bx": bx,                                              # (1, 3H) f32
        "bhn": bhn,                                            # (1, H)  f32
        "w1": params["out1_w"].T.astype(bf16),                 # (H, H)
        "b1": params["out1_b"].reshape(1, H).astype(f32),      # (1, H)
        "w2": params["out2_w"].T.astype(bf16),                 # (H, out_feat)
    }


# ----------------------------------------------------------------------------
# Jitted wrapper
# ----------------------------------------------------------------------------
def _decoder_cell_forward(y, prev_hidden, packed):
    """y: (B, T, D_in) batch_first, prev_hidden: (1, B, H).

    Returns (output (B, T, out_feat), hidden (1, B, H)) matching PyTorch
    DecoderCell forward (GRU arch, num_layers=1, eval mode).
    """
    B, T, D_in = y.shape
    H = packed["wh"].shape[0]
    F = packed["w2"].shape[1]
    Bp = ((B + 7) // 8) * 8        # pad batch to f32 sublane height

    # Time-major, zero-padded batch (layout plumbing only; row = t*Bp + b).
    y_tm = jnp.transpose(y, (1, 0, 2)).astype(jnp.float32)     # (T, B, D_in)
    y_tm = jnp.pad(y_tm, ((0, 0), (0, Bp - B), (0, 0)))
    y2d = y_tm.reshape(T * Bp, D_in).astype(jnp.bfloat16)

    h0 = jnp.pad(prev_hidden[0].astype(jnp.float32), ((0, Bp - B), (0, 0)))

    vmem = pl.BlockSpec(memory_space=pltpu.MemorySpace.VMEM)

    out2d, hidden = pl.pallas_call(
        _decoder_cell_kernel,
        out_shape=(
            jax.ShapeDtypeStruct((T * Bp, F), jnp.float32),
            jax.ShapeDtypeStruct((Bp, H), jnp.float32),
        ),
        in_specs=[vmem] * 9,
        out_specs=(vmem, vmem),
    )(y2d, h0, packed["wx"], packed["bx"], packed["wh"], packed["bhn"],
      packed["w1"], packed["b1"], packed["w2"])

    out = jnp.transpose(out2d.reshape(T, Bp, F)[:, :B, :], (1, 0, 2))  # (B,T,F)
    return out, hidden[:B][None, :, :]


decoder_cell_forward = jax.jit(_decoder_cell_forward)


# ----------------------------------------------------------------------------
# Pure-JAX f32 reference for verification
# ----------------------------------------------------------------------------
def decoder_cell_reference(y, prev_hidden, params):
    H = params["w_hh"].shape[1]
    w_ih, w_hh = params["w_ih"], params["w_hh"]
    b_ih, b_hh = params["b_ih"], params["b_hh"]

    def step(h, x):
        gx = x @ w_ih.T + b_ih
        gh = h @ w_hh.T + b_hh
        r = jax.nn.sigmoid(gx[:, :H] + gh[:, :H])
        z = jax.nn.sigmoid(gx[:, H:2 * H] + gh[:, H:2 * H])
        n = jnp.tanh(gx[:, 2 * H:] + r * gh[:, 2 * H:])
        h_new = (1.0 - z) * n + z * h
        return h_new, h_new

    y_tm = jnp.transpose(y, (1, 0, 2))
    h_final, hs = jax.lax.scan(step, prev_hidden[0], y_tm)
    rnn_out = jnp.transpose(hs, (1, 0, 2))
    o = jnp.maximum(rnn_out @ params["out1_w"].T + params["out1_b"], 0.0)
    o = o @ params["out2_w"].T
    return o, h_final[None, :, :]


# ----------------------------------------------------------------------------
# Main
# ----------------------------------------------------------------------------
if __name__ == "__main__":
    # Module hyper-params (GRU arch): input_size = in_feat_len + out_feat_len.
    in_feat_len, out_feat_len, hidden_size, num_layers = 4, 4, 32, 1
    B, T = 2, 8
    D_in = in_feat_len + out_feat_len

    key = jax.random.PRNGKey(0)
    ks = jax.random.split(key, 10)
    k_gru = 1.0 / math.sqrt(hidden_size)

    params = {
        "w_ih": jax.random.uniform(ks[0], (3 * hidden_size, D_in), jnp.float32, -k_gru, k_gru),
        "w_hh": jax.random.uniform(ks[1], (3 * hidden_size, hidden_size), jnp.float32, -k_gru, k_gru),
        "b_ih": jax.random.uniform(ks[2], (3 * hidden_size,), jnp.float32, -k_gru, k_gru),
        "b_hh": jax.random.uniform(ks[3], (3 * hidden_size,), jnp.float32, -k_gru, k_gru),
        "out1_w": jax.random.uniform(ks[4], (hidden_size, hidden_size), jnp.float32, -k_gru, k_gru),
        "out1_b": jax.random.uniform(ks[5], (hidden_size,), jnp.float32, -k_gru, k_gru),
        "out2_w": jax.random.uniform(ks[6], (out_feat_len, hidden_size), jnp.float32, -k_gru, k_gru),
    }

    y = jax.random.normal(ks[7], (B, T, D_in), jnp.float32)
    prev_hidden = jax.random.normal(ks[8], (num_layers, B, hidden_size), jnp.float32)

    # Pack / transpose / cast weights once, outside the per-call path.
    packed = jax.tree_util.tree_map(jax.block_until_ready, pack_decoder_params(params))

    out, hidden = decoder_cell_forward(y, prev_hidden, packed)
    out = jax.block_until_ready(out)
    hidden = jax.block_until_ready(hidden)

    ref_out, ref_hidden = decoder_cell_reference(y, prev_hidden, params)
    assert out.shape == (B, T, out_feat_len)
    assert hidden.shape == (num_layers, B, hidden_size)
    # Tolerance relaxed vs. the pure-f32 reference because MXU operands are
    # bf16 (f32 accumulation); rounding compounds over the T=8 recurrence.
    assert jnp.allclose(out, ref_out, atol=2e-2, rtol=2e-2)
    assert jnp.allclose(hidden, ref_hidden, atol=2e-2, rtol=2e-2)

    print("KERNEL_OK")
</pallas_src>

<mosaic_0001>
module attributes {stable_mosaic.version = 11 : i64} {
  func.func @_decoder_cell_kernel(%arg0: memref<64x8xbf16, #tpu.memory_space<vmem>>, %arg1: memref<8x32xf32, #tpu.memory_space<vmem>>, %arg2: memref<8x96xbf16, #tpu.memory_space<vmem>>, %arg3: memref<1x96xf32, #tpu.memory_space<vmem>>, %arg4: memref<32x96xbf16, #tpu.memory_space<vmem>>, %arg5: memref<1x32xf32, #tpu.memory_space<vmem>>, %arg6: memref<32x32xbf16, #tpu.memory_space<vmem>>, %arg7: memref<1x32xf32, #tpu.memory_space<vmem>>, %arg8: memref<32x4xbf16, #tpu.memory_space<vmem>>, %arg9: memref<64x4xf32, #tpu.memory_space<vmem>>, %arg10: memref<8x32xf32, #tpu.memory_space<vmem>>) attributes {dimension_semantics = [], scalar_prefetch = 0 : i64, scratch_operands = 0 : i64, tpu.core_type = #tpu.core_type<tc>} {
    %c0 = arith.constant 0 : index
    %c0_0 = arith.constant 0 : index
    %0 = vector.load %arg0[%c0, %c0_0] : memref<64x8xbf16, #tpu.memory_space<vmem>>, vector<64x8xbf16>
    %c0_1 = arith.constant 0 : index
    %c0_2 = arith.constant 0 : index
    %1 = vector.load %arg2[%c0_1, %c0_2] : memref<8x96xbf16, #tpu.memory_space<vmem>>, vector<8x96xbf16>
    %cst = arith.constant dense<0.000000e+00> : vector<64x96xf32>
    %2 = tpu.matmul %0, %1, %cst {dimension_numbers = #tpu.dot_dimension_numbers<[1], [0], [0], [1], [0, 0, 1, 1], [], []>} : vector<64x8xbf16>, vector<8x96xbf16>, vector<64x96xf32> -> vector<64x96xf32>
    %c0_3 = arith.constant 0 : index
    %c0_4 = arith.constant 0 : index
    %3 = vector.load %arg3[%c0_3, %c0_4] : memref<1x96xf32, #tpu.memory_space<vmem>>, vector<1x96xf32>
    %4 = vector.broadcast %3 : vector<1x96xf32> to vector<64x96xf32>
    %5 = arith.addf %2, %4 : vector<64x96xf32>
    %c0_5 = arith.constant 0 : index
    %c0_6 = arith.constant 0 : index
    %6 = vector.load %arg4[%c0_5, %c0_6] : memref<32x96xbf16, #tpu.memory_space<vmem>>, vector<32x96xbf16>
    %c0_7 = arith.constant 0 : index
    %c0_8 = arith.constant 0 : index
    %7 = vector.load %arg5[%c0_7, %c0_8] : memref<1x32xf32, #tpu.memory_space<vmem>>, vector<1x32xf32>
    %c0_9 = arith.constant 0 : index
    %c0_10 = arith.constant 0 : index
    %8 = vector.load %arg1[%c0_9, %c0_10] : memref<8x32xf32, #tpu.memory_space<vmem>>, vector<8x32xf32>
    %9 = arith.truncf %8 : vector<8x32xf32> to vector<8x32xbf16>
    %cst_11 = arith.constant dense<0.000000e+00> : vector<8x96xf32>
    %10 = tpu.matmul %9, %6, %cst_11 {dimension_numbers = #tpu.dot_dimension_numbers<[1], [0], [0], [1], [0, 0, 1, 1], [], []>} : vector<8x32xbf16>, vector<32x96xbf16>, vector<8x96xf32> -> vector<8x96xf32>
    %11 = vector.extract_strided_slice %5 {offsets = [0, 0], sizes = [8, 96], strides = [1, 1]} : vector<64x96xf32> to vector<8x96xf32>
    %12 = vector.extract_strided_slice %11 {offsets = [0, 0], sizes = [8, 32], strides = [1, 1]} : vector<8x96xf32> to vector<8x32xf32>
    %13 = vector.extract_strided_slice %10 {offsets = [0, 0], sizes = [8, 32], strides = [1, 1]} : vector<8x96xf32> to vector<8x32xf32>
    %14 = arith.addf %12, %13 : vector<8x32xf32>
    %15 = arith.negf %14 : vector<8x32xf32>
    %16 = math.exp %15 : vector<8x32xf32>
    %cst_12 = arith.constant 1.000000e+00 : f32
    %17 = vector.broadcast %cst_12 : f32 to vector<8x32xf32>
    %18 = arith.addf %17, %16 : vector<8x32xf32>
    %19 = arith.divf %17, %18 : vector<8x32xf32>
    %20 = vector.extract_strided_slice %11 {offsets = [0, 32], sizes = [8, 32], strides = [1, 1]} : vector<8x96xf32> to vector<8x32xf32>
    %21 = vector.extract_strided_slice %10 {offsets = [0, 32], sizes = [8, 32], strides = [1, 1]} : vector<8x96xf32> to vector<8x32xf32>
    %22 = arith.addf %20, %21 : vector<8x32xf32>
    %23 = arith.negf %22 : vector<8x32xf32>
    %24 = math.exp %23 : vector<8x32xf32>
    %cst_13 = arith.constant 1.000000e+00 : f32
    %25 = vector.broadcast %cst_13 : f32 to vector<8x32xf32>
    %26 = arith.addf %25, %24 : vector<8x32xf32>
    %27 = arith.divf %25, %26 : vector<8x32xf32>
    %28 = vector.extract_strided_slice %11 {offsets = [0, 64], sizes = [8, 32], strides = [1, 1]} : vector<8x96xf32> to vector<8x32xf32>
    %29 = vector.extract_strided_slice %10 {offsets = [0, 64], sizes = [8, 32], strides = [1, 1]} : vector<8x96xf32> to vector<8x32xf32>
    %30 = vector.broadcast %7 : vector<1x32xf32> to vector<8x32xf32>
    %31 = arith.addf %29, %30 : vector<8x32xf32>
    %32 = arith.mulf %19, %31 : vector<8x32xf32>
    %33 = arith.addf %28, %32 : vector<8x32xf32>
    %34 = math.tanh %33 : vector<8x32xf32>
    %35 = arith.subf %8, %34 : vector<8x32xf32>
    %36 = arith.mulf %27, %35 : vector<8x32xf32>
    %37 = arith.addf %34, %36 : vector<8x32xf32>
    %38 = arith.truncf %37 : vector<8x32xf32> to vector<8x32xbf16>
    %cst_14 = arith.constant dense<0.000000e+00> : vector<8x96xf32>
    %39 = tpu.matmul %38, %6, %cst_14 {dimension_numbers = #tpu.dot_dimension_numbers<[1], [0], [0], [1], [0, 0, 1, 1], [], []>} : vector<8x32xbf16>, vector<32x96xbf16>, vector<8x96xf32> -> vector<8x96xf32>
    %40 = vector.extract_strided_slice %5 {offsets = [8, 0], sizes = [8, 96], strides = [1, 1]} : vector<64x96xf32> to vector<8x96xf32>
    %41 = vector.extract_strided_slice %40 {offsets = [0, 0], sizes = [8, 32], strides = [1, 1]} : vector<8x96xf32> to vector<8x32xf32>
    %42 = vector.extract_strided_slice %39 {offsets = [0, 0], sizes = [8, 32], strides = [1, 1]} : vector<8x96xf32> to vector<8x32xf32>
    %43 = arith.addf %41, %42 : vector<8x32xf32>
    %44 = arith.negf %43 : vector<8x32xf32>
    %45 = math.exp %44 : vector<8x32xf32>
    %cst_15 = arith.constant 1.000000e+00 : f32
    %46 = vector.broadcast %cst_15 : f32 to vector<8x32xf32>
    %47 = arith.addf %46, %45 : vector<8x32xf32>
    %48 = arith.divf %46, %47 : vector<8x32xf32>
    %49 = vector.extract_strided_slice %40 {offsets = [0, 32], sizes = [8, 32], strides = [1, 1]} : vector<8x96xf32> to vector<8x32xf32>
    %50 = vector.extract_strided_slice %39 {offsets = [0, 32], sizes = [8, 32], strides = [1, 1]} : vector<8x96xf32> to vector<8x32xf32>
    %51 = arith.addf %49, %50 : vector<8x32xf32>
    %52 = arith.negf %51 : vector<8x32xf32>
    %53 = math.exp %52 : vector<8x32xf32>
    %cst_16 = arith.constant 1.000000e+00 : f32
    %54 = vector.broadcast %cst_16 : f32 to vector<8x32xf32>
    %55 = arith.addf %54, %53 : vector<8x32xf32>
    %56 = arith.divf %54, %55 : vector<8x32xf32>
    %57 = vector.extract_strided_slice %40 {offsets = [0, 64], sizes = [8, 32], strides = [1, 1]} : vector<8x96xf32> to vector<8x32xf32>
    %58 = vector.extract_strided_slice %39 {offsets = [0, 64], sizes = [8, 32], strides = [1, 1]} : vector<8x96xf32> to vector<8x32xf32>
    %59 = vector.broadcast %7 : vector<1x32xf32> to vector<8x32xf32>
    %60 = arith.addf %58, %59 : vector<8x32xf32>
    %61 = arith.mulf %48, %60 : vector<8x32xf32>
    %62 = arith.addf %57, %61 : vector<8x32xf32>
    %63 = math.tanh %62 : vector<8x32xf32>
    %64 = arith.subf %37, %63 : vector<8x32xf32>
    %65 = arith.mulf %56, %64 : vector<8x32xf32>
    %66 = arith.addf %63, %65 : vector<8x32xf32>
    %67 = arith.truncf %66 : vector<8x32xf32> to vector<8x32xbf16>
    %cst_17 = arith.constant dense<0.000000e+00> : vector<8x96xf32>
    %68 = tpu.matmul %67, %6, %cst_17 {dimension_numbers = #tpu.dot_dimension_numbers<[1], [0], [0], [1], [0, 0, 1, 1], [], []>} : vector<8x32xbf16>, vector<32x96xbf16>, vector<8x96xf32> -> vector<8x96xf32>
    %69 = vector.extract_strided_slice %5 {offsets = [16, 0], sizes = [8, 96], strides = [1, 1]} : vector<64x96xf32> to vector<8x96xf32>
    %70 = vector.extract_strided_slice %69 {offsets = [0, 0], sizes = [8, 32], strides = [1, 1]} : vector<8x96xf32> to vector<8x32xf32>
    %71 = vector.extract_strided_slice %68 {offsets = [0, 0], sizes = [8, 32], strides = [1, 1]} : vector<8x96xf32> to vector<8x32xf32>
    %72 = arith.addf %70, %71 : vector<8x32xf32>
    %73 = arith.negf %72 : vector<8x32xf32>
    %74 = math.exp %73 : vector<8x32xf32>
    %cst_18 = arith.constant 1.000000e+00 : f32
    %75 = vector.broadcast %cst_18 : f32 to vector<8x32xf32>
    %76 = arith.addf %75, %74 : vector<8x32xf32>
    %77 = arith.divf %75, %76 : vector<8x32xf32>
    %78 = vector.extract_strided_slice %69 {offsets = [0, 32], sizes = [8, 32], strides = [1, 1]} : vector<8x96xf32> to vector<8x32xf32>
    %79 = vector.extract_strided_slice %68 {offsets = [0, 32], sizes = [8, 32], strides = [1, 1]} : vector<8x96xf32> to vector<8x32xf32>
    %80 = arith.addf %78, %79 : vector<8x32xf32>
    %81 = arith.negf %80 : vector<8x32xf32>
    %82 = math.exp %81 : vector<8x32xf32>
    %cst_19 = arith.constant 1.000000e+00 : f32
    %83 = vector.broadcast %cst_19 : f32 to vector<8x32xf32>
    %84 = arith.addf %83, %82 : vector<8x32xf32>
    %85 = arith.divf %83, %84 : vector<8x32xf32>
    %86 = vector.extract_strided_slice %69 {offsets = [0, 64], sizes = [8, 32], strides = [1, 1]} : vector<8x96xf32> to vector<8x32xf32>
    %87 = vector.extract_strided_slice %68 {offsets = [0, 64], sizes = [8, 32], strides = [1, 1]} : vector<8x96xf32> to vector<8x32xf32>
    %88 = vector.broadcast %7 : vector<1x32xf32> to vector<8x32xf32>
    %89 = arith.addf %87, %88 : vector<8x32xf32>
    %90 = arith.mulf %77, %89 : vector<8x32xf32>
    %91 = arith.addf %86, %90 : vector<8x32xf32>
    %92 = math.tanh %91 : vector<8x32xf32>
    %93 = arith.subf %66, %92 : vector<8x32xf32>
    %94 = arith.mulf %85, %93 : vector<8x32xf32>
    %95 = arith.addf %92, %94 : vector<8x32xf32>
    %96 = arith.truncf %95 : vector<8x32xf32> to vector<8x32xbf16>
    %cst_20 = arith.constant dense<0.000000e+00> : vector<8x96xf32>
    %97 = tpu.matmul %96, %6, %cst_20 {dimension_numbers = #tpu.dot_dimension_numbers<[1], [0], [0], [1], [0, 0, 1, 1], [], []>} : vector<8x32xbf16>, vector<32x96xbf16>, vector<8x96xf32> -> vector<8x96xf32>
    %98 = vector.extract_strided_slice %5 {offsets = [24, 0], sizes = [8, 96], strides = [1, 1]} : vector<64x96xf32> to vector<8x96xf32>
    %99 = vector.extract_strided_slice %98 {offsets = [0, 0], sizes = [8, 32], strides = [1, 1]} : vector<8x96xf32> to vector<8x32xf32>
    %100 = vector.extract_strided_slice %97 {offsets = [0, 0], sizes = [8, 32], strides = [1, 1]} : vector<8x96xf32> to vector<8x32xf32>
    %101 = arith.addf %99, %100 : vector<8x32xf32>
    %102 = arith.negf %101 : vector<8x32xf32>
    %103 = math.exp %102 : vector<8x32xf32>
    %cst_21 = arith.constant 1.000000e+00 : f32
    %104 = vector.broadcast %cst_21 : f32 to vector<8x32xf32>
    %105 = arith.addf %104, %103 : vector<8x32xf32>
    %106 = arith.divf %104, %105 : vector<8x32xf32>
    %107 = vector.extract_strided_slice %98 {offsets = [0, 32], sizes = [8, 32], strides = [1, 1]} : vector<8x96xf32> to vector<8x32xf32>
    %108 = vector.extract_strided_slice %97 {offsets = [0, 32], sizes = [8, 32], strides = [1, 1]} : vector<8x96xf32> to vector<8x32xf32>
    %109 = arith.addf %107, %108 : vector<8x32xf32>
    %110 = arith.negf %109 : vector<8x32xf32>
    %111 = math.exp %110 : vector<8x32xf32>
    %cst_22 = arith.constant 1.000000e+00 : f32
    %112 = vector.broadcast %cst_22 : f32 to vector<8x32xf32>
    %113 = arith.addf %112, %111 : vector<8x32xf32>
    %114 = arith.divf %112, %113 : vector<8x32xf32>
    %115 = vector.extract_strided_slice %98 {offsets = [0, 64], sizes = [8, 32], strides = [1, 1]} : vector<8x96xf32> to vector<8x32xf32>
    %116 = vector.extract_strided_slice %97 {offsets = [0, 64], sizes = [8, 32], strides = [1, 1]} : vector<8x96xf32> to vector<8x32xf32>
    %117 = vector.broadcast %7 : vector<1x32xf32> to vector<8x32xf32>
    %118 = arith.addf %116, %117 : vector<8x32xf32>
    %119 = arith.mulf %106, %118 : vector<8x32xf32>
    %120 = arith.addf %115, %119 : vector<8x32xf32>
    %121 = math.tanh %120 : vector<8x32xf32>
    %122 = arith.subf %95, %121 : vector<8x32xf32>
    %123 = arith.mulf %114, %122 : vector<8x32xf32>
    %124 = arith.addf %121, %123 : vector<8x32xf32>
    %125 = arith.truncf %124 : vector<8x32xf32> to vector<8x32xbf16>
    %cst_23 = arith.constant dense<0.000000e+00> : vector<8x96xf32>
    %126 = tpu.matmul %125, %6, %cst_23 {dimension_numbers = #tpu.dot_dimension_numbers<[1], [0], [0], [1], [0, 0, 1, 1], [], []>} : vector<8x32xbf16>, vector<32x96xbf16>, vector<8x96xf32> -> vector<8x96xf32>
    %127 = vector.extract_strided_slice %5 {offsets = [32, 0], sizes = [8, 96], strides = [1, 1]} : vector<64x96xf32> to vector<8x96xf32>
    %128 = vector.extract_strided_slice %127 {offsets = [0, 0], sizes = [8, 32], strides = [1, 1]} : vector<8x96xf32> to vector<8x32xf32>
    %129 = vector.extract_strided_slice %126 {offsets = [0, 0], sizes = [8, 32], strides = [1, 1]} : vector<8x96xf32> to vector<8x32xf32>
    %130 = arith.addf %128, %129 : vector<8x32xf32>
    %131 = arith.negf %130 : vector<8x32xf32>
    %132 = math.exp %131 : vector<8x32xf32>
    %cst_24 = arith.constant 1.000000e+00 : f32
    %133 = vector.broadcast %cst_24 : f32 to vector<8x32xf32>
    %134 = arith.addf %133, %132 : vector<8x32xf32>
    %135 = arith.divf %133, %134 : vector<8x32xf32>
    %136 = vector.extract_strided_slice %127 {offsets = [0, 32], sizes = [8, 32], strides = [1, 1]} : vector<8x96xf32> to vector<8x32xf32>
    %137 = vector.extract_strided_slice %126 {offsets = [0, 32], sizes = [8, 32], strides = [1, 1]} : vector<8x96xf32> to vector<8x32xf32>
    %138 = arith.addf %136, %137 : vector<8x32xf32>
    %139 = arith.negf %138 : vector<8x32xf32>
    %140 = math.exp %139 : vector<8x32xf32>
    %cst_25 = arith.constant 1.000000e+00 : f32
    %141 = vector.broadcast %cst_25 : f32 to vector<8x32xf32>
    %142 = arith.addf %141, %140 : vector<8x32xf32>
    %143 = arith.divf %141, %142 : vector<8x32xf32>
    %144 = vector.extract_strided_slice %127 {offsets = [0, 64], sizes = [8, 32], strides = [1, 1]} : vector<8x96xf32> to vector<8x32xf32>
    %145 = vector.extract_strided_slice %126 {offsets = [0, 64], sizes = [8, 32], strides = [1, 1]} : vector<8x96xf32> to vector<8x32xf32>
    %146 = vector.broadcast %7 : vector<1x32xf32> to vector<8x32xf32>
    %147 = arith.addf %145, %146 : vector<8x32xf32>
    %148 = arith.mulf %135, %147 : vector<8x32xf32>
    %149 = arith.addf %144, %148 : vector<8x32xf32>
    %150 = math.tanh %149 : vector<8x32xf32>
    %151 = arith.subf %124, %150 : vector<8x32xf32>
    %152 = arith.mulf %143, %151 : vector<8x32xf32>
    %153 = arith.addf %150, %152 : vector<8x32xf32>
    %154 = arith.truncf %153 : vector<8x32xf32> to vector<8x32xbf16>
    %cst_26 = arith.constant dense<0.000000e+00> : vector<8x96xf32>
    %155 = tpu.matmul %154, %6, %cst_26 {dimension_numbers = #tpu.dot_dimension_numbers<[1], [0], [0], [1], [0, 0, 1, 1], [], []>} : vector<8x32xbf16>, vector<32x96xbf16>, vector<8x96xf32> -> vector<8x96xf32>
    %156 = vector.extract_strided_slice %5 {offsets = [40, 0], sizes = [8, 96], strides = [1, 1]} : vector<64x96xf32> to vector<8x96xf32>
    %157 = vector.extract_strided_slice %156 {offsets = [0, 0], sizes = [8, 32], strides = [1, 1]} : vector<8x96xf32> to vector<8x32xf32>
    %158 = vector.extract_strided_slice %155 {offsets = [0, 0], sizes = [8, 32], strides = [1, 1]} : vector<8x96xf32> to vector<8x32xf32>
    %159 = arith.addf %157, %158 : vector<8x32xf32>
    %160 = arith.negf %159 : vector<8x32xf32>
    %161 = math.exp %160 : vector<8x32xf32>
    %cst_27 = arith.constant 1.000000e+00 : f32
    %162 = vector.broadcast %cst_27 : f32 to vector<8x32xf32>
    %163 = arith.addf %162, %161 : vector<8x32xf32>
    %164 = arith.divf %162, %163 : vector<8x32xf32>
    %165 = vector.extract_strided_slice %156 {offsets = [0, 32], sizes = [8, 32], strides = [1, 1]} : vector<8x96xf32> to vector<8x32xf32>
    %166 = vector.extract_strided_slice %155 {offsets = [0, 32], sizes = [8, 32], strides = [1, 1]} : vector<8x96xf32> to vector<8x32xf32>
    %167 = arith.addf %165, %166 : vector<8x32xf32>
    %168 = arith.negf %167 : vector<8x32xf32>
    %169 = math.exp %168 : vector<8x32xf32>
    %cst_28 = arith.constant 1.000000e+00 : f32
    %170 = vector.broadcast %cst_28 : f32 to vector<8x32xf32>
    %171 = arith.addf %170, %169 : vector<8x32xf32>
    %172 = arith.divf %170, %171 : vector<8x32xf32>
    %173 = vector.extract_strided_slice %156 {offsets = [0, 64], sizes = [8, 32], strides = [1, 1]} : vector<8x96xf32> to vector<8x32xf32>
    %174 = vector.extract_strided_slice %155 {offsets = [0, 64], sizes = [8, 32], strides = [1, 1]} : vector<8x96xf32> to vector<8x32xf32>
    %175 = vector.broadcast %7 : vector<1x32xf32> to vector<8x32xf32>
    %176 = arith.addf %174, %175 : vector<8x32xf32>
    %177 = arith.mulf %164, %176 : vector<8x32xf32>
    %178 = arith.addf %173, %177 : vector<8x32xf32>
    %179 = math.tanh %178 : vector<8x32xf32>
    %180 = arith.subf %153, %179 : vector<8x32xf32>
    %181 = arith.mulf %172, %180 : vector<8x32xf32>
    %182 = arith.addf %179, %181 : vector<8x32xf32>
    %183 = arith.truncf %182 : vector<8x32xf32> to vector<8x32xbf16>
    %cst_29 = arith.constant dense<0.000000e+00> : vector<8x96xf32>
    %184 = tpu.matmul %183, %6, %cst_29 {dimension_numbers = #tpu.dot_dimension_numbers<[1], [0], [0], [1], [0, 0, 1, 1], [], []>} : vector<8x32xbf16>, vector<32x96xbf16>, vector<8x96xf32> -> vector<8x96xf32>
    %185 = vector.extract_strided_slice %5 {offsets = [48, 0], sizes = [8, 96], strides = [1, 1]} : vector<64x96xf32> to vector<8x96xf32>
    %186 = vector.extract_strided_slice %185 {offsets = [0, 0], sizes = [8, 32], strides = [1, 1]} : vector<8x96xf32> to vector<8x32xf32>
    %187 = vector.extract_strided_slice %184 {offsets = [0, 0], sizes = [8, 32], strides = [1, 1]} : vector<8x96xf32> to vector<8x32xf32>
    %188 = arith.addf %186, %187 : vector<8x32xf32>
    %189 = arith.negf %188 : vector<8x32xf32>
    %190 = math.exp %189 : vector<8x32xf32>
    %cst_30 = arith.constant 1.000000e+00 : f32
    %191 = vector.broadcast %cst_30 : f32 to vector<8x32xf32>
    %192 = arith.addf %191, %190 : vector<8x32xf32>
    %193 = arith.divf %191, %192 : vector<8x32xf32>
    %194 = vector.extract_strided_slice %185 {offsets = [0, 32], sizes = [8, 32], strides = [1, 1]} : vector<8x96xf32> to vector<8x32xf32>
    %195 = vector.extract_strided_slice %184 {offsets = [0, 32], sizes = [8, 32], strides = [1, 1]} : vector<8x96xf32> to vector<8x32xf32>
    %196 = arith.addf %194, %195 : vector<8x32xf32>
    %197 = arith.negf %196 : vector<8x32xf32>
    %198 = math.exp %197 : vector<8x32xf32>
    %cst_31 = arith.constant 1.000000e+00 : f32
    %199 = vector.broadcast %cst_31 : f32 to vector<8x32xf32>
    %200 = arith.addf %199, %198 : vector<8x32xf32>
    %201 = arith.divf %199, %200 : vector<8x32xf32>
    %202 = vector.extract_strided_slice %185 {offsets = [0, 64], sizes = [8, 32], strides = [1, 1]} : vector<8x96xf32> to vector<8x32xf32>
    %203 = vector.extract_strided_slice %184 {offsets = [0, 64], sizes = [8, 32], strides = [1, 1]} : vector<8x96xf32> to vector<8x32xf32>
    %204 = vector.broadcast %7 : vector<1x32xf32> to vector<8x32xf32>
    %205 = arith.addf %203, %204 : vector<8x32xf32>
    %206 = arith.mulf %193, %205 : vector<8x32xf32>
    %207 = arith.addf %202, %206 : vector<8x32xf32>
    %208 = math.tanh %207 : vector<8x32xf32>
    %209 = arith.subf %182, %208 : vector<8x32xf32>
    %210 = arith.mulf %201, %209 : vector<8x32xf32>
    %211 = arith.addf %208, %210 : vector<8x32xf32>
    %212 = arith.truncf %211 : vector<8x32xf32> to vector<8x32xbf16>
    %cst_32 = arith.constant dense<0.000000e+00> : vector<8x96xf32>
    %213 = tpu.matmul %212, %6, %cst_32 {dimension_numbers = #tpu.dot_dimension_numbers<[1], [0], [0], [1], [0, 0, 1, 1], [], []>} : vector<8x32xbf16>, vector<32x96xbf16>, vector<8x96xf32> -> vector<8x96xf32>
    %214 = vector.extract_strided_slice %5 {offsets = [56, 0], sizes = [8, 96], strides = [1, 1]} : vector<64x96xf32> to vector<8x96xf32>
    %215 = vector.extract_strided_slice %214 {offsets = [0, 0], sizes = [8, 32], strides = [1, 1]} : vector<8x96xf32> to vector<8x32xf32>
    %216 = vector.extract_strided_slice %213 {offsets = [0, 0], sizes = [8, 32], strides = [1, 1]} : vector<8x96xf32> to vector<8x32xf32>
    %217 = arith.addf %215, %216 : vector<8x32xf32>
    %218 = arith.negf %217 : vector<8x32xf32>
    %219 = math.exp %218 : vector<8x32xf32>
    %cst_33 = arith.constant 1.000000e+00 : f32
    %220 = vector.broadcast %cst_33 : f32 to vector<8x32xf32>
    %221 = arith.addf %220, %219 : vector<8x32xf32>
    %222 = arith.divf %220, %221 : vector<8x32xf32>
    %223 = vector.extract_strided_slice %214 {offsets = [0, 32], sizes = [8, 32], strides = [1, 1]} : vector<8x96xf32> to vector<8x32xf32>
    %224 = vector.extract_strided_slice %213 {offsets = [0, 32], sizes = [8, 32], strides = [1, 1]} : vector<8x96xf32> to vector<8x32xf32>
    %225 = arith.addf %223, %224 : vector<8x32xf32>
    %226 = arith.negf %225 : vector<8x32xf32>
    %227 = math.exp %226 : vector<8x32xf32>
    %cst_34 = arith.constant 1.000000e+00 : f32
    %228 = vector.broadcast %cst_34 : f32 to vector<8x32xf32>
    %229 = arith.addf %228, %227 : vector<8x32xf32>
    %230 = arith.divf %228, %229 : vector<8x32xf32>
    %231 = vector.extract_strided_slice %214 {offsets = [0, 64], sizes = [8, 32], strides = [1, 1]} : vector<8x96xf32> to vector<8x32xf32>
    %232 = vector.extract_strided_slice %213 {offsets = [0, 64], sizes = [8, 32], strides = [1, 1]} : vector<8x96xf32> to vector<8x32xf32>
    %233 = vector.broadcast %7 : vector<1x32xf32> to vector<8x32xf32>
    %234 = arith.addf %232, %233 : vector<8x32xf32>
    %235 = arith.mulf %222, %234 : vector<8x32xf32>
    %236 = arith.addf %231, %235 : vector<8x32xf32>
    %237 = math.tanh %236 : vector<8x32xf32>
    %238 = arith.subf %211, %237 : vector<8x32xf32>
    %239 = arith.mulf %230, %238 : vector<8x32xf32>
    %240 = arith.addf %237, %239 : vector<8x32xf32>
    %c0_35 = arith.constant 0 : index
    %c0_36 = arith.constant 0 : index
    %241 = vector.load %arg10[%c0_35, %c0_36] : memref<8x32xf32, #tpu.memory_space<vmem>>, vector<8x32xf32>
    tpu.vector_store %arg10[%c0_35, %c0_36], %240 {strides = array<i32>} : memref<8x32xf32, #tpu.memory_space<vmem>>, vector<8x32xf32>,
    %242 = tpu.concatenate %37, %66, %95, %124, %153, %182, %211, %240 in 0 : vector<8x32xf32>, vector<8x32xf32>, vector<8x32xf32>, vector<8x32xf32>, vector<8x32xf32>, vector<8x32xf32>, vector<8x32xf32>, vector<8x32xf32> -> vector<64x32xf32>
    %243 = arith.truncf %242 : vector<64x32xf32> to vector<64x32xbf16>
    %c0_37 = arith.constant 0 : index
    %c0_38 = arith.constant 0 : index
    %244 = vector.load %arg6[%c0_37, %c0_38] : memref<32x32xbf16, #tpu.memory_space<vmem>>, vector<32x32xbf16>
    %cst_39 = arith.constant dense<0.000000e+00> : vector<64x32xf32>
    %245 = tpu.matmul %243, %244, %cst_39 {dimension_numbers = #tpu.dot_dimension_numbers<[1], [0], [0], [1], [0, 0, 1, 1], [], []>} : vector<64x32xbf16>, vector<32x32xbf16>, vector<64x32xf32> -> vector<64x32xf32>
    %c0_40 = arith.constant 0 : index
    %c0_41 = arith.constant 0 : index
    %246 = vector.load %arg7[%c0_40, %c0_41] : memref<1x32xf32, #tpu.memory_space<vmem>>, vector<1x32xf32>
    %247 = vector.broadcast %246 : vector<1x32xf32> to vector<64x32xf32>
    %248 = arith.addf %245, %247 : vector<64x32xf32>
    %cst_42 = arith.constant 0.000000e+00 : f32
    %249 = vector.broadcast %cst_42 : f32 to vector<64x32xf32>
    %250 = arith.maximumf %248, %249 : vector<64x32xf32>
    %251 = arith.truncf %250 : vector<64x32xf32> to vector<64x32xbf16>
    %c0_43 = arith.constant 0 : index
    %c0_44 = arith.constant 0 : index
    %252 = vector.load %arg8[%c0_43, %c0_44] : memref<32x4xbf16, #tpu.memory_space<vmem>>, vector<32x4xbf16>
    %cst_45 = arith.constant dense<0.000000e+00> : vector<64x4xf32>
    %253 = tpu.matmul %251, %252, %cst_45 {dimension_numbers = #tpu.dot_dimension_numbers<[1], [0], [0], [1], [0, 0, 1, 1], [], []>} : vector<64x32xbf16>, vector<32x4xbf16>, vector<64x4xf32> -> vector<64x4xf32>
    %c0_46 = arith.constant 0 : index
    %c0_47 = arith.constant 0 : index
    %254 = vector.load %arg9[%c0_46, %c0_47] : memref<64x4xf32, #tpu.memory_space<vmem>>, vector<64x4xf32>
    tpu.vector_store %arg9[%c0_46, %c0_47], %253 {strides = array<i32>} : memref<64x4xf32, #tpu.memory_space<vmem>>, vector<64x4xf32>,
    return
  }
}

</mosaic_0001>

<llo_original>
// kernel: _decoder_cell_forward.1
$region0: #{_decoder_cell_forward.1}
  #allocation0 [shape = 'u32[]', space=smem, size = 0x4, offset = 0x4, fixed_abs, tag = 'smem constant byte address 0x4 - core index']
  #allocation1 [shape = 'u32[72,128]{1,0:T(1,128)}', space=vmem, size = 0x9000, scoped, tag = 'internal scratch']
  %s0 = inlined_call_operand.vmem [shape: bf16[64,8], index: 0, kind: input, shape index: {}]
  %s1 = inlined_call_operand.vmem [shape: f32[8,32], index: 1, kind: input, shape index: {}]
  %s2 = inlined_call_operand.vmem [shape: bf16[8,96], index: 2, kind: input, shape index: {}]
  %s3 = inlined_call_operand.vmem [shape: f32[1,96], index: 3, kind: input, shape index: {}]
  %s4 = inlined_call_operand.vmem [shape: bf16[32,96], index: 4, kind: input, shape index: {}]
  %s5 = inlined_call_operand.vmem [shape: f32[1,32], index: 5, kind: input, shape index: {}]
  %s6 = inlined_call_operand.vmem [shape: bf16[32,32], index: 6, kind: input, shape index: {}]
  %s7 = inlined_call_operand.vmem [shape: f32[1,32], index: 7, kind: input, shape index: {}]
  %s8 = inlined_call_operand.vmem [shape: bf16[32,4], index: 8, kind: input, shape index: {}]
  %s9 = inlined_call_operand.vmem [shape: f32[64,4], index: 9, kind: output, shape index: {0}]
  %s10 = inlined_call_operand.vmem [shape: f32[8,32], index: 10, kind: output, shape index: {1}]
  %11 = xla_tuple %s9, %s10
  %s12 = sld [smem:[#allocation0]]
  $region54: #{_decoder_cell_forward.1} parent=0
    _
  %s14 = ssub.s32 1, %s12
  %s15 = scalar_select 0, %s14, %s12
  // Predicated region
  $region2: #{_decoder_cell_forward.1} parent=0 // pred_check
    _
  $region3: #{_decoder_cell_forward.1} parent=0 // pred_check_branch
    %17 = sbr.rel (0) target = $region5
  $region4: #{_decoder_cell_forward.1} parent=0 // pred_region
    _
  $region5: #{_decoder_cell_forward.1} parent=0 // pred_fallthru
    _
  // Predicated region
  $region6: #{_decoder_cell_forward.1} parent=0 // pred_check
    _
  $region7: #{_decoder_cell_forward.1} parent=0 // pred_check_branch
    %19 = sbr.rel (0) target = $region9
  $region8: #{_decoder_cell_forward.1} parent=0 // pred_region
    _
  $region9: #{_decoder_cell_forward.1} parent=0 // pred_fallthru
    _
  // Predicated region
  $region10: #{_decoder_cell_forward.1} parent=0 // pred_check
    _
  $region11: #{_decoder_cell_forward.1} parent=0 // pred_check_branch
    %21 = sbr.rel (0) target = $region13
  $region12: #{_decoder_cell_forward.1} parent=0 // pred_region
    _
  $region13: #{_decoder_cell_forward.1} parent=0 // pred_fallthru
    _
  // Predicated region
  $region14: #{_decoder_cell_forward.1} parent=0 // pred_check
    _
  $region15: #{_decoder_cell_forward.1} parent=0 // pred_check_branch
    %23 = sbr.rel (0) target = $region17
  $region16: #{_decoder_cell_forward.1} parent=0 // pred_region
    _
  $region17: #{_decoder_cell_forward.1} parent=0 // pred_fallthru
    _
  // Predicated region
  $region18: #{_decoder_cell_forward.1} parent=0 // pred_check
    _
  $region19: #{_decoder_cell_forward.1} parent=0 // pred_check_branch
    %25 = sbr.rel (0) target = $region21
  $region20: #{_decoder_cell_forward.1} parent=0 // pred_region
    _
  $region21: #{_decoder_cell_forward.1} parent=0 // pred_fallthru
    _
  // Predicated region
  $region22: #{_decoder_cell_forward.1} parent=0 // pred_check
    _
  $region23: #{_decoder_cell_forward.1} parent=0 // pred_check_branch
    %27 = sbr.rel (0) target = $region25
  $region24: #{_decoder_cell_forward.1} parent=0 // pred_region
    _
  $region25: #{_decoder_cell_forward.1} parent=0 // pred_fallthru
    _
  // Predicated region
  $region26: #{_decoder_cell_forward.1} parent=0 // pred_check
    _
  $region27: #{_decoder_cell_forward.1} parent=0 // pred_check_branch
    %29 = sbr.rel (0) target = $region29
  $region28: #{_decoder_cell_forward.1} parent=0 // pred_region
    _
  $region29: #{_decoder_cell_forward.1} parent=0 // pred_fallthru
    _
  // Predicated region
  $region30: #{_decoder_cell_forward.1} parent=0 // pred_check
    _
  $region31: #{_decoder_cell_forward.1} parent=0 // pred_check_branch
    %31 = sbr.rel (0) target = $region33
  $region32: #{_decoder_cell_forward.1} parent=0 // pred_region
    _
  $region33: #{_decoder_cell_forward.1} parent=0 // pred_fallthru
    _
  // Predicated region
  $region34: #{_decoder_cell_forward.1} parent=0 // pred_check
    _
  $region35: #{_decoder_cell_forward.1} parent=0 // pred_check_branch
    %33 = sbr.rel (0) target = $region37
  $region36: #{_decoder_cell_forward.1} parent=0 // pred_region
    _
  $region37: #{_decoder_cell_forward.1} parent=0 // pred_fallthru
    _
  %v35 = vld [vmem:[%s0] sm:$0xf]
  %v36 = vld [vmem:[%s0 + $0x4] sm:$0xf]
  %v37 = vld [vmem:[%s0 + $0x8] sm:$0xf]
  %v38 = vld [vmem:[%s0 + $0xc] sm:$0xf]
  %v39 = vld [vmem:[%s0 + $0x10] sm:$0xf]
  %v40 = vld [vmem:[%s0 + $0x14] sm:$0xf]
  %v41 = vld [vmem:[%s0 + $0x18] sm:$0xf]
  %v42 = vld [vmem:[%s0 + $0x1c] sm:$0xf]
  %v43 = vld [vmem:[%s2] sm:$0xf]
  %v44 = vld [vmem:[%s3] sm:$0x1]
  %v46 = vperm.slane %v44, 0
  %v56 = vunpack.c.l.b16 %v35
  %v57 = vunpack.c.l.b16 %v36
  %v58 = vunpack.c.l.b16 %v37
  %v59 = vunpack.c.l.b16 %v38
  %v60 = vunpack.c.l.b16 %v39
  %v61 = vunpack.c.l.b16 %v40
  %v62 = vunpack.c.l.b16 %v41
  %v63 = vunpack.c.l.b16 %v42
  %v64 = vpack.c.b16 %v57, %v56
  %v65 = vpack.c.b16 %v59, %v58
  %v66 = vpack.c.b16 %v61, %v60
  %v67 = vpack.c.b16 %v63, %v62
  %vm68 = vcmask 64512
  %v70 = vsel %vm68, %v64, 0
  %v73 = vsel %vm68, %v65, 0
  %v76 = vsel %vm68, %v66, 0
  %v79 = vsel %vm68, %v67, 0
  %vm81 = vcmask 1043456
  %v83 = vsel %vm81, %v43, 0
  %85 = vmatpush.bf16.msra.mxu0 0
  %86 = vmatpush.bf16.msra.mxu0 0
  %87 = vmatpush.bf16.msra.mxu0 0
  %88 = vmatpush.bf16.msra.mxu0 0
  %89 = vmatpush.bf16.msra.mxu0 0
  %90 = vmatpush.bf16.msra.mxu0 0
  %91 = vmatpush.bf16.msra.mxu0 0
  %92 = vmatpush.bf16.msra.mxu0 %v83
  %93 = vmatmul.bf16.gmra.mxu0 %v70
  %v94 = vpop.f32.mrf.mxu0
  %v95 = vadd.f32 %v46, %v94
  %v96 = vpop.f32.mrf.mxu0
  %v97 = vadd.f32 %v46, %v96
  %98 = vmatmul.bf16.gmra.mxu0 %v73
  %v99 = vpop.f32.mrf.mxu0
  %v100 = vadd.f32 %v46, %v99
  %v101 = vpop.f32.mrf.mxu0
  %v102 = vadd.f32 %v46, %v101
  %103 = vmatmul.bf16.gmra.mxu0 %v76
  %v104 = vpop.f32.mrf.mxu0
  %v105 = vadd.f32 %v46, %v104
  %v106 = vpop.f32.mrf.mxu0
  %v107 = vadd.f32 %v46, %v106
  %108 = vmatmul.bf16.gmra.mxu0 %v79
  %v109 = vpop.f32.mrf.mxu0
  %v110 = vadd.f32 %v46, %v109
  %v111 = vpop.f32.mrf.mxu0
  %v112 = vadd.f32 %v46, %v111
  %113 = vdwg.mxu0
  %v114 = vld [vmem:[%s4] sm:$0xf]
  %v115 = vld [vmem:[%s4 + $0x4] sm:$0xf]
  %v116 = vld [vmem:[%s4 + $0x8] sm:$0xf]
  %v117 = vld [vmem:[%s4 + $0xc] sm:$0xf]
  %v118 = vld [vmem:[%s5] sm:$0x1]
  %v119 = vld [vmem:[%s1] sm:$0xff]
  %v120 = vpack.c.bf16 %v119, %v119
  %v125 = vunpack.c.l.b16 %v114
  %v126 = vunpack.c.l.b16 %v115
  %v127 = vunpack.c.l.b16 %v116
  %v128 = vunpack.c.l.b16 %v117
  %v129 = vpack.c.b16 %v126, %v125
  %v130 = vpack.c.b16 %v128, %v127
  %vm133 = vcmask 261120
  %v135 = vsel %vm133, %v120, 0
  %137 = vmatpush.bf16.msra.mxu0 0
  %138 = vmatpush.bf16.msra.mxu0 0
  %139 = vmatpush.bf16.msra.mxu0 0
  %140 = vmatpush.bf16.msra.mxu0 0
  %141 = vmatpush.bf16.msra.mxu0 0
  %142 = vmatpush.bf16.msra.mxu0 0
  %143 = vmatpush.bf16.msra.mxu0 %v130
  %144 = vmatpush.bf16.msra.mxu0 %v129
  %145 = vmatmul.bf16.gmra.mxu0 %v135
  %v146 = vpop.f32.mrf.mxu0
  %v147 = vadd.f32 0.0, %v146
  %v148 = vpop.f32.mrf.mxu0
  %149 = vdwg.mxu0
  %v150 = vadd.f32 %v95, %v147
  %v151 = vxor.u32 %v150, 2147483648
  %v152 = vmul.f32 %v151, 1.442695
  %v153 = vpow.pop %v152
  %v154 = vadd.f32 %v153, 1.0
  %v155 = vrcp.pop %v154
  %v156 = vmul.f32 %v154, %v155
  %v157 = vsub.f32 1.0, %v156
  %v158 = vmul.f32 %v155, %v157
  %v159 = vadd.f32 %v155, %v158
  %vm160 = vweird.f32 %v154
  %vm161 = vweird.f32 %v155
  %vm162 = vmor %vm160, %vm161
  %v163 = vsel %vm162, %v155, %v159
  %v164 = vand.u32 2147483647, %v154
  %vm165 = vcmp.eq.f32.partialorder %v164, 8.507059e+37
  %v166 = vand.u32 %v154, 2147483648
  %v167 = vor.u32 1.1754944e-38, %v166
  %v168 = vsel %vm165, %v167, %v163
  %v169 = vmul.f32 1.0, %v168
  %v171 = vperm.slane %v118, 0
  %172 = vrot.lane.b32.xlu0 %v171, 64
  %v173 = vpop.permute.xlu0 %172
  %v175 = vadd.f32 %v147, %v173
  %177 = vrot.lane.b32.xlu0 %v175, 64
  %v178 = vpop.permute.xlu0 %177
  %v180 = vmul.f32 %v169, %v178
  %182 = vrot.lane.b32.xlu0 %v180, 64
  %v183 = vpop.permute.xlu0 %182
  %v185 = vadd.f32 %v95, %v183
  %v186 = vtanh.pop %v185
  %188 = vrot.lane.b32.xlu0 %v186, 64
  %v189 = vpop.permute.xlu0 %188
  %v191 = vsub.f32 %v119, %v189
  %193 = vrot.lane.b32.xlu0 %v191, 32
  %v194 = vpop.permute.xlu0 %193
  %v196 = vmul.f32 %v169, %v194
  %198 = vrot.lane.b32.xlu0 %v196, 32
  %v199 = vpop.permute.xlu0 %198
  %v201 = vadd.f32 %v186, %v199
  %v202 = vpack.c.bf16 %v201, %v201
  %204 = vrot.lane.b32.xlu0 %v202, 64
  %v205 = vpop.permute.xlu0 %204
  %v207 = vsel %vm133, %v205, 0
  %209 = vmatpush.bf16.msra.mxu0 0
  %210 = vmatpush.bf16.msra.mxu0 0
  %211 = vmatpush.bf16.msra.mxu0 0
  %212 = vmatpush.bf16.msra.mxu0 0
  %213 = vmatpush.bf16.msra.mxu0 0
  %214 = vmatpush.bf16.msra.mxu0 0
  %215 = vmatpush.bf16.msra.mxu0 %v130
  %216 = vmatpush.bf16.msra.mxu0 %v129
  %217 = vmatmul.bf16.gmra.mxu0 %v207
  %v218 = vpop.f32.mrf.mxu0
  %v219 = vadd.f32 0.0, %v218
  %v220 = vpop.f32.mrf.mxu0
  %221 = vdwg.mxu0
  %v222 = vadd.f32 %v97, %v219
  %v223 = vxor.u32 %v222, 2147483648
  %v224 = vmul.f32 %v223, 1.442695
  %v225 = vpow.pop %v224
  %v226 = vadd.f32 %v225, 1.0
  %v227 = vrcp.pop %v226
  %v228 = vmul.f32 %v226, %v227
  %v229 = vsub.f32 1.0, %v228
  %v230 = vmul.f32 %v227, %v229
  %v231 = vadd.f32 %v227, %v230
  %vm232 = vweird.f32 %v226
  %vm233 = vweird.f32 %v227
  %vm234 = vmor %vm232, %vm233
  %v235 = vsel %vm234, %v227, %v231
  %v236 = vand.u32 2147483647, %v226
  %vm237 = vcmp.eq.f32.partialorder %v236, 8.507059e+37
  %v238 = vand.u32 %v226, 2147483648
  %v239 = vor.u32 1.1754944e-38, %v238
  %v240 = vsel %vm237, %v239, %v235
  %v241 = vmul.f32 1.0, %v240
  %v242 = vadd.f32 %v219, %v173
  %244 = vrot.lane.b32.xlu0 %v242, 64
  %v245 = vpop.permute.xlu0 %244
  %v247 = vmul.f32 %v241, %v245
  %249 = vrot.lane.b32.xlu0 %v247, 64
  %v250 = vpop.permute.xlu0 %249
  %v252 = vadd.f32 %v97, %v250
  %v253 = vtanh.pop %v252
  %v254 = vsub.f32 %v201, %v253
  %256 = vrot.lane.b32.xlu0 %v254, 96
  %v257 = vpop.permute.xlu0 %256
  %v259 = vmul.f32 %v241, %v257
  %261 = vrot.lane.b32.xlu0 %v259, 32
  %v262 = vpop.permute.xlu0 %261
  %v264 = vadd.f32 %v253, %v262
  %v265 = vpack.c.bf16 %v264, %v264
  %267 = vrot.lane.b32.xlu0 %v265, 64
  %v268 = vpop.permute.xlu0 %267
  %v270 = vsel %vm133, %v268, 0
  %272 = vmatpush.bf16.msra.mxu0 0
  %273 = vmatpush.bf16.msra.mxu0 0
  %274 = vmatpush.bf16.msra.mxu0 0
  %275 = vmatpush.bf16.msra.mxu0 0
  %276 = vmatpush.bf16.msra.mxu0 0
  %277 = vmatpush.bf16.msra.mxu0 0
  %278 = vmatpush.bf16.msra.mxu0 %v130
  %279 = vmatpush.bf16.msra.mxu0 %v129
  %280 = vmatmul.bf16.gmra.mxu0 %v270
  %v281 = vpop.f32.mrf.mxu0
  %v282 = vadd.f32 0.0, %v281
  %v283 = vpop.f32.mrf.mxu0
  %284 = vdwg.mxu0
  %v285 = vadd.f32 %v100, %v282
  %v286 = vxor.u32 %v285, 2147483648
  %v287 = vmul.f32 %v286, 1.442695
  %v288 = vpow.pop %v287
  %v289 = vadd.f32 %v288, 1.0
  %v290 = vrcp.pop %v289
  %v291 = vmul.f32 %v289, %v290
  %v292 = vsub.f32 1.0, %v291
  %v293 = vmul.f32 %v290, %v292
  %v294 = vadd.f32 %v290, %v293
  %vm295 = vweird.f32 %v289
  %vm296 = vweird.f32 %v290
  %vm297 = vmor %vm295, %vm296
  %v298 = vsel %vm297, %v290, %v294
  %v299 = vand.u32 2147483647, %v289
  %vm300 = vcmp.eq.f32.partialorder %v299, 8.507059e+37
  %v301 = vand.u32 %v289, 2147483648
  %v302 = vor.u32 1.1754944e-38, %v301
  %v303 = vsel %vm300, %v302, %v298
  %v304 = vmul.f32 1.0, %v303
  %v305 = vadd.f32 %v282, %v173
  %307 = vrot.lane.b32.xlu0 %v305, 64
  %v308 = vpop.permute.xlu0 %307
  %v310 = vmul.f32 %v304, %v308
  %312 = vrot.lane.b32.xlu0 %v310, 64
  %v313 = vpop.permute.xlu0 %312
  %v315 = vadd.f32 %v100, %v313
  %v316 = vtanh.pop %v315
  %v317 = vsub.f32 %v264, %v316
  %319 = vrot.lane.b32.xlu0 %v317, 96
  %v320 = vpop.permute.xlu0 %319
  %v322 = vmul.f32 %v304, %v320
  %324 = vrot.lane.b32.xlu0 %v322, 32
  %v325 = vpop.permute.xlu0 %324
  %v327 = vadd.f32 %v316, %v325
  %v328 = vpack.c.bf16 %v327, %v327
  %330 = vrot.lane.b32.xlu0 %v328, 64
  %v331 = vpop.permute.xlu0 %330
  %v333 = vsel %vm133, %v331, 0
  %335 = vmatpush.bf16.msra.mxu0 0
  %336 = vmatpush.bf16.msra.mxu0 0
  %337 = vmatpush.bf16.msra.mxu0 0
  %338 = vmatpush.bf16.msra.mxu0 0
  %339 = vmatpush.bf16.msra.mxu0 0
  %340 = vmatpush.bf16.msra.mxu0 0
  %341 = vmatpush.bf16.msra.mxu0 %v130
  %342 = vmatpush.bf16.msra.mxu0 %v129
  %343 = vmatmul.bf16.gmra.mxu0 %v333
  %v344 = vpop.f32.mrf.mxu0
  %v345 = vadd.f32 0.0, %v344
  %v346 = vpop.f32.mrf.mxu0
  %347 = vdwg.mxu0
  %v348 = vadd.f32 %v102, %v345
  %v349 = vxor.u32 %v348, 2147483648
  %v350 = vmul.f32 %v349, 1.442695
  %v351 = vpow.pop %v350
  %v352 = vadd.f32 %v351, 1.0
  %v353 = vrcp.pop %v352
  %v354 = vmul.f32 %v352, %v353
  %v355 = vsub.f32 1.0, %v354
  %v356 = vmul.f32 %v353, %v355
  %v357 = vadd.f32 %v353, %v356
  %vm358 = vweird.f32 %v352
  %vm359 = vweird.f32 %v353
  %vm360 = vmor %vm358, %vm359
  %v361 = vsel %vm360, %v353, %v357
  %v362 = vand.u32 2147483647, %v352
  %vm363 = vcmp.eq.f32.partialorder %v362, 8.507059e+37
  %v364 = vand.u32 %v352, 2147483648
  %v365 = vor.u32 1.1754944e-38, %v364
  %v366 = vsel %vm363, %v365, %v361
  %v367 = vmul.f32 1.0, %v366
  %v368 = vadd.f32 %v345, %v173
  %370 = vrot.lane.b32.xlu0 %v368, 64
  %v371 = vpop.permute.xlu0 %370
  %v373 = vmul.f32 %v367, %v371
  %375 = vrot.lane.b32.xlu0 %v373, 64
  %v376 = vpop.permute.xlu0 %375
  %v378 = vadd.f32 %v102, %v376
  %v379 = vtanh.pop %v378
  %v380 = vsub.f32 %v327, %v379
  %382 = vrot.lane.b32.xlu0 %v380, 96
  %v383 = vpop.permute.xlu0 %382
  %v385 = vmul.f32 %v367, %v383
  %387 = vrot.lane.b32.xlu0 %v385, 32
  %v388 = vpop.permute.xlu0 %387
  %v390 = vadd.f32 %v379, %v388
  %v391 = vpack.c.bf16 %v390, %v390
  %393 = vrot.lane.b32.xlu0 %v391, 64
  %v394 = vpop.permute.xlu0 %393
  %v396 = vsel %vm133, %v394, 0
  %398 = vmatpush.bf16.msra.mxu0 0
  %399 = vmatpush.bf16.msra.mxu0 0
  %400 = vmatpush.bf16.msra.mxu0 0
  %401 = vmatpush.bf16.msra.mxu0 0
  %402 = vmatpush.bf16.msra.mxu0 0
  %403 = vmatpush.bf16.msra.mxu0 0
  %404 = vmatpush.bf16.msra.mxu0 %v130
  %405 = vmatpush.bf16.msra.mxu0 %v129
  %406 = vmatmul.bf16.gmra.mxu0 %v396
  %v407 = vpop.f32.mrf.mxu0
  %v408 = vadd.f32 0.0, %v407
  %v409 = vpop.f32.mrf.mxu0
  %410 = vdwg.mxu0
  %v411 = vadd.f32 %v105, %v408
  %v412 = vxor.u32 %v411, 2147483648
  %v413 = vmul.f32 %v412, 1.442695
  %v414 = vpow.pop %v413
  %v415 = vadd.f32 %v414, 1.0
  %v416 = vrcp.pop %v415
  %v417 = vmul.f32 %v415, %v416
  %v418 = vsub.f32 1.0, %v417
  %v419 = vmul.f32 %v416, %v418
  %v420 = vadd.f32 %v416, %v419
  %vm421 = vweird.f32 %v415
  %vm422 = vweird.f32 %v416
  %vm423 = vmor %vm421, %vm422
  %v424 = vsel %vm423, %v416, %v420
  %v425 = vand.u32 2147483647, %v415
  %vm426 = vcmp.eq.f32.partialorder %v425, 8.507059e+37
  %v427 = vand.u32 %v415, 2147483648
  %v428 = vor.u32 1.1754944e-38, %v427
  %v429 = vsel %vm426, %v428, %v424
  %v430 = vmul.f32 1.0, %v429
  %v431 = vadd.f32 %v408, %v173
  %433 = vrot.lane.b32.xlu0 %v431, 64
  %v434 = vpop.permute.xlu0 %433
  %v436 = vmul.f32 %v430, %v434
  %438 = vrot.lane.b32.xlu0 %v436, 64
  %v439 = vpop.permute.xlu0 %438
  %v441 = vadd.f32 %v105, %v439
  %v442 = vtanh.pop %v441
  %v443 = vsub.f32 %v390, %v442
  %445 = vrot.lane.b32.xlu0 %v443, 96
  %v446 = vpop.permute.xlu0 %445
  %v448 = vmul.f32 %v430, %v446
  %450 = vrot.lane.b32.xlu0 %v448, 32
  %v451 = vpop.permute.xlu0 %450
  %v453 = vadd.f32 %v442, %v451
  %v454 = vpack.c.bf16 %v453, %v453
  %456 = vrot.lane.b32.xlu0 %v454, 64
  %v457 = vpop.permute.xlu0 %456
  %v459 = vsel %vm133, %v457, 0
  %461 = vmatpush.bf16.msra.mxu0 0
  %462 = vmatpush.bf16.msra.mxu0 0
  %463 = vmatpush.bf16.msra.mxu0 0
  %464 = vmatpush.bf16.msra.mxu0 0
  %465 = vmatpush.bf16.msra.mxu0 0
  %466 = vmatpush.bf16.msra.mxu0 0
  %467 = vmatpush.bf16.msra.mxu0 %v130
  %468 = vmatpush.bf16.msra.mxu0 %v129
  %469 = vmatmul.bf16.gmra.mxu0 %v459
  %v470 = vpop.f32.mrf.mxu0
  %v471 = vadd.f32 0.0, %v470
  %v472 = vpop.f32.mrf.mxu0
  %473 = vdwg.mxu0
  %v474 = vadd.f32 %v107, %v471
  %v475 = vxor.u32 %v474, 2147483648
  %v476 = vmul.f32 %v475, 1.442695
  %v477 = vpow.pop %v476
  %v478 = vadd.f32 %v477, 1.0
  %v479 = vrcp.pop %v478
  %v480 = vmul.f32 %v478, %v479
  %v481 = vsub.f32 1.0, %v480
  %v482 = vmul.f32 %v479, %v481
  %v483 = vadd.f32 %v479, %v482
  %vm484 = vweird.f32 %v478
  %vm485 = vweird.f32 %v479
  %vm486 = vmor %vm484, %vm485
  %v487 = vsel %vm486, %v479, %v483
  %v488 = vand.u32 2147483647, %v478
  %vm489 = vcmp.eq.f32.partialorder %v488, 8.507059e+37
  %v490 = vand.u32 %v478, 2147483648
  %v491 = vor.u32 1.1754944e-38, %v490
  %v492 = vsel %vm489, %v491, %v487
  %v493 = vmul.f32 1.0, %v492
  %v494 = vadd.f32 %v471, %v173
  %496 = vrot.lane.b32.xlu0 %v494, 64
  %v497 = vpop.permute.xlu0 %496
  %v499 = vmul.f32 %v493, %v497
  %501 = vrot.lane.b32.xlu0 %v499, 64
  %v502 = vpop.permute.xlu0 %501
  %v504 = vadd.f32 %v107, %v502
  %v505 = vtanh.pop %v504
  %v506 = vsub.f32 %v453, %v505
  %508 = vrot.lane.b32.xlu0 %v506, 96
  %v509 = vpop.permute.xlu0 %508
  %v511 = vmul.f32 %v493, %v509
  %513 = vrot.lane.b32.xlu0 %v511, 32
  %v514 = vpop.permute.xlu0 %513
  %v516 = vadd.f32 %v505, %v514
  %v517 = vpack.c.bf16 %v516, %v516
  %519 = vrot.lane.b32.xlu0 %v517, 64
  %v520 = vpop.permute.xlu0 %519
  %v522 = vsel %vm133, %v520, 0
  %524 = vmatpush.bf16.msra.mxu0 0
  %525 = vmatpush.bf16.msra.mxu0 0
  %526 = vmatpush.bf16.msra.mxu0 0
  %527 = vmatpush.bf16.msra.mxu0 0
  %528 = vmatpush.bf16.msra.mxu0 0
  %529 = vmatpush.bf16.msra.mxu0 0
  %530 = vmatpush.bf16.msra.mxu0 %v130
  %531 = vmatpush.bf16.msra.mxu0 %v129
  %532 = vmatmul.bf16.gmra.mxu0 %v522
  %v533 = vpop.f32.mrf.mxu0
  %v534 = vadd.f32 0.0, %v533
  %v535 = vpop.f32.mrf.mxu0
  %536 = vdwg.mxu0
  %v537 = vadd.f32 %v110, %v534
  %v538 = vxor.u32 %v537, 2147483648
  %v539 = vmul.f32 %v538, 1.442695
  %v540 = vpow.pop %v539
  %v541 = vadd.f32 %v540, 1.0
  %v542 = vrcp.pop %v541
  %v543 = vmul.f32 %v541, %v542
  %v544 = vsub.f32 1.0, %v543
  %v545 = vmul.f32 %v542, %v544
  %v546 = vadd.f32 %v542, %v545
  %vm547 = vweird.f32 %v541
  %vm548 = vweird.f32 %v542
  %vm549 = vmor %vm547, %vm548
  %v550 = vsel %vm549, %v542, %v546
  %v551 = vand.u32 2147483647, %v541
  %vm552 = vcmp.eq.f32.partialorder %v551, 8.507059e+37
  %v553 = vand.u32 %v541, 2147483648
  %v554 = vor.u32 1.1754944e-38, %v553
  %v555 = vsel %vm552, %v554, %v550
  %v556 = vmul.f32 1.0, %v555
  %v557 = vadd.f32 %v534, %v173
  %559 = vrot.lane.b32.xlu0 %v557, 64
  %v560 = vpop.permute.xlu0 %559
  %v562 = vmul.f32 %v556, %v560
  %564 = vrot.lane.b32.xlu0 %v562, 64
  %v565 = vpop.permute.xlu0 %564
  %v567 = vadd.f32 %v110, %v565
  %v568 = vtanh.pop %v567
  %v569 = vsub.f32 %v516, %v568
  %571 = vrot.lane.b32.xlu0 %v569, 96
  %v572 = vpop.permute.xlu0 %571
  %v574 = vmul.f32 %v556, %v572
  %576 = vrot.lane.b32.xlu0 %v574, 32
  %v577 = vpop.permute.xlu0 %576
  %v579 = vadd.f32 %v568, %v577
  %v580 = vpack.c.bf16 %v579, %v579
  %582 = vrot.lane.b32.xlu0 %v580, 64
  %v583 = vpop.permute.xlu0 %582
  %v585 = vsel %vm133, %v583, 0
  %587 = vmatpush.bf16.msra.mxu0 0
  %588 = vmatpush.bf16.msra.mxu0 0
  %589 = vmatpush.bf16.msra.mxu0 0
  %590 = vmatpush.bf16.msra.mxu0 0
  %591 = vmatpush.bf16.msra.mxu0 0
  %592 = vmatpush.bf16.msra.mxu0 0
  %593 = vmatpush.bf16.msra.mxu0 %v130
  %594 = vmatpush.bf16.msra.mxu0 %v129
  %595 = vmatmul.bf16.gmra.mxu0 %v585
  %v596 = vpop.f32.mrf.mxu0
  %v597 = vadd.f32 0.0, %v596
  %v598 = vpop.f32.mrf.mxu0
  %599 = vdwg.mxu0
  %v600 = vadd.f32 %v112, %v597
  %v601 = vxor.u32 %v600, 2147483648
  %v602 = vmul.f32 %v601, 1.442695
  %v603 = vpow.pop %v602
  %v604 = vadd.f32 %v603, 1.0
  %v605 = vrcp.pop %v604
  %v606 = vmul.f32 %v604, %v605
  %v607 = vsub.f32 1.0, %v606
  %v608 = vmul.f32 %v605, %v607
  %v609 = vadd.f32 %v605, %v608
  %vm610 = vweird.f32 %v604
  %vm611 = vweird.f32 %v605
  %vm612 = vmor %vm610, %vm611
  %v613 = vsel %vm612, %v605, %v609
  %v614 = vand.u32 2147483647, %v604
  %vm615 = vcmp.eq.f32.partialorder %v614, 8.507059e+37
  %v616 = vand.u32 %v604, 2147483648
  %v617 = vor.u32 1.1754944e-38, %v616
  %v618 = vsel %vm615, %v617, %v613
  %v619 = vmul.f32 1.0, %v618
  %v620 = vadd.f32 %v597, %v173
  %622 = vrot.lane.b32.xlu0 %v620, 64
  %v623 = vpop.permute.xlu0 %622
  %v625 = vmul.f32 %v619, %v623
  %627 = vrot.lane.b32.xlu0 %v625, 64
  %v628 = vpop.permute.xlu0 %627
  %v630 = vadd.f32 %v112, %v628
  %v631 = vtanh.pop %v630
  %v632 = vsub.f32 %v579, %v631
  %634 = vrot.lane.b32.xlu0 %v632, 96
  %v635 = vpop.permute.xlu0 %634
  %v637 = vmul.f32 %v619, %v635
  %639 = vrot.lane.b32.xlu0 %v637, 32
  %v640 = vpop.permute.xlu0 %639
  %v642 = vadd.f32 %v631, %v640
  %644 = vrot.lane.b32.xlu0 %v642, 64
  %v645 = vpop.permute.xlu0 %644
  %647 = vst.msk [vmem:[%s10] sm:$0xff] %vm133, %v645
  %v648 = vpack.c.bf16 %v264, %v201
  %v649 = vpack.c.bf16 %v390, %v327
  %v650 = vpack.c.bf16 %v516, %v453
  %v651 = vpack.c.bf16 %v642, %v579
  %v652 = vld [vmem:[%s6] sm:$0xf]
  %v653 = vld [vmem:[%s6 + $0x4] sm:$0xf]
  %v654 = vld [vmem:[%s6 + $0x8] sm:$0xf]
  %v655 = vld [vmem:[%s6 + $0xc] sm:$0xf]
  %v656 = vld [vmem:[%s7] sm:$0x1]
  %v658 = vperm.slane %v656, 0
  %664 = vrot.lane.b32.xlu0 %v648, 64
  %v665 = vpop.permute.xlu0 %664
  %666 = vrot.lane.b32.xlu0 %v649, 64
  %v667 = vpop.permute.xlu0 %666
  %668 = vrot.lane.b32.xlu0 %v650, 64
  %v669 = vpop.permute.xlu0 %668
  %670 = vrot.lane.b32.xlu0 %v651, 64
  %v671 = vpop.permute.xlu0 %670
  %v676 = vunpack.c.l.b16 %v652
  %v677 = vunpack.c.l.b16 %v653
  %v678 = vunpack.c.l.b16 %v654
  %v679 = vunpack.c.l.b16 %v655
  %v680 = vpack.c.b16 %v677, %v676
  %v681 = vpack.c.b16 %v679, %v678
  %v685 = vsel %vm133, %v665, 0
  %v688 = vsel %vm133, %v667, 0
  %v691 = vsel %vm133, %v669, 0
  %v694 = vsel %vm133, %v671, 0
  %696 = vmatpush.bf16.msra.mxu0 0
  %697 = vmatpush.bf16.msra.mxu0 0
  %698 = vmatpush.bf16.msra.mxu0 0
  %699 = vmatpush.bf16.msra.mxu0 0
  %700 = vmatpush.bf16.msra.mxu0 0
  %701 = vmatpush.bf16.msra.mxu0 0
  %702 = vmatpush.bf16.msra.mxu0 %v681
  %703 = vmatpush.bf16.msra.mxu0 %v680
  %704 = vmatmul.bf16.gmra.mxu0 %v685
  %v705 = vpop.f32.mrf.mxu0
  %v706 = vadd.f32 %v658, %v705
  %v707 = vpop.f32.mrf.mxu0
  %v708 = vadd.f32 %v658, %v707
  %709 = vmatmul.bf16.gmra.mxu0 %v688
  %v710 = vpop.f32.mrf.mxu0
  %v711 = vadd.f32 %v658, %v710
  %v712 = vpop.f32.mrf.mxu0
  %v713 = vadd.f32 %v658, %v712
  %714 = vmatmul.bf16.gmra.mxu0 %v691
  %v715 = vpop.f32.mrf.mxu0
  %v716 = vadd.f32 %v658, %v715
  %v717 = vpop.f32.mrf.mxu0
  %v718 = vadd.f32 %v658, %v717
  %719 = vmatmul.bf16.gmra.mxu0 %v694
  %v720 = vpop.f32.mrf.mxu0
  %v721 = vadd.f32 %v658, %v720
  %v722 = vpop.f32.mrf.mxu0
  %v723 = vadd.f32 %v658, %v722
  %724 = vdwg.mxu0
  %v725 = vmax.f32 %v706, 0.0
  %v726 = vmax.f32 %v708, 0.0
  %v727 = vmax.f32 %v711, 0.0
  %v728 = vmax.f32 %v713, 0.0
  %v729 = vmax.f32 %v716, 0.0
  %v730 = vmax.f32 %v718, 0.0
  %v731 = vmax.f32 %v721, 0.0
  %v732 = vmax.f32 %v723, 0.0
  %v733 = vpack.c.bf16 %v726, %v725
  %v734 = vpack.c.bf16 %v728, %v727
  %v735 = vpack.c.bf16 %v730, %v729
  %v736 = vpack.c.bf16 %v732, %v731
  %v737 = vld [vmem:[%s8] sm:$0xf]
  %v738 = vld [vmem:[%s8 + $0x4] sm:$0xf]
  %v739 = vld [vmem:[%s8 + $0x8] sm:$0xf]
  %v740 = vld [vmem:[%s8 + $0xc] sm:$0xf]
  %v745 = vunpack.c.l.b16 %v737
  %v746 = vunpack.c.l.b16 %v738
  %v747 = vunpack.c.l.b16 %v739
  %v748 = vunpack.c.l.b16 %v740
  %v749 = vpack.c.b16 %v746, %v745
  %v750 = vpack.c.b16 %v748, %v747
  %v754 = vsel %vm133, %v733, 0
  %v757 = vsel %vm133, %v734, 0
  %v760 = vsel %vm133, %v735, 0
  %v763 = vsel %vm133, %v736, 0
  %765 = vmatpush.bf16.msra.mxu0 0
  %766 = vmatpush.bf16.msra.mxu0 0
  %767 = vmatpush.bf16.msra.mxu0 0
  %768 = vmatpush.bf16.msra.mxu0 0
  %769 = vmatpush.bf16.msra.mxu0 0
  %770 = vmatpush.bf16.msra.mxu0 0
  %771 = vmatpush.bf16.msra.mxu0 %v750
  %772 = vmatpush.bf16.msra.mxu0 %v749
  %773 = vmatmul.bf16.gmra.mxu0 %v754
  %v774 = vpop.f32.mrf.mxu0
  %v775 = vadd.f32 0.0, %v774
  %v776 = vpop.f32.mrf.mxu0
  %v777 = vadd.f32 0.0, %v776
  %778 = vmatmul.bf16.gmra.mxu0 %v757
  %v779 = vpop.f32.mrf.mxu0
  %v780 = vadd.f32 0.0, %v779
  %v781 = vpop.f32.mrf.mxu0
  %v782 = vadd.f32 0.0, %v781
  %783 = vmatmul.bf16.gmra.mxu0 %v760
  %v784 = vpop.f32.mrf.mxu0
  %v785 = vadd.f32 0.0, %v784
  %v786 = vpop.f32.mrf.mxu0
  %v787 = vadd.f32 0.0, %v786
  %788 = vmatmul.bf16.gmra.mxu0 %v763
  %v789 = vpop.f32.mrf.mxu0
  %v790 = vadd.f32 0.0, %v789
  %v791 = vpop.f32.mrf.mxu0
  %v792 = vadd.f32 0.0, %v791
  %793 = vdwg.mxu0
  %vm794 = vcmask 31744
  %795 = vst.msk [vmem:[%s9] sm:$0xff] %vm794, %v775
  %796 = vst.msk [vmem:[%s9 + $0x8] sm:$0xff] %vm794, %v777
  %797 = vst.msk [vmem:[%s9 + $0x10] sm:$0xff] %vm794, %v780
  %798 = vst.msk [vmem:[%s9 + $0x18] sm:$0xff] %vm794, %v782
  %799 = vst.msk [vmem:[%s9 + $0x20] sm:$0xff] %vm794, %v785
  %800 = vst.msk [vmem:[%s9 + $0x28] sm:$0xff] %vm794, %v787
  %801 = vst.msk [vmem:[%s9 + $0x30] sm:$0xff] %vm794, %v790
  %802 = vst.msk [vmem:[%s9 + $0x38] sm:$0xff] %vm794, %v792
  // Predicated region
  $region38: #{_decoder_cell_forward.1} parent=0 // pred_check
    _
  $region39: #{_decoder_cell_forward.1} parent=0 // pred_check_branch
    %804 = sbr.rel (0) target = $region41
  $region40: #{_decoder_cell_forward.1} parent=0 // pred_region
    _
  $region41: #{_decoder_cell_forward.1} parent=0 // pred_fallthru
    _
  // Predicated region
  $region42: #{_decoder_cell_forward.1} parent=0 // pred_check
    _
  $region43: #{_decoder_cell_forward.1} parent=0 // pred_check_branch
    %806 = sbr.rel (0) target = $region45
  $region44: #{_decoder_cell_forward.1} parent=0 // pred_region
    _
  $region45: #{_decoder_cell_forward.1} parent=0 // pred_fallthru
    _
  // Predicated region
  $region46: #{_decoder_cell_forward.1} parent=0 // pred_check
    _
  $region47: #{_decoder_cell_forward.1} parent=0 // pred_check_branch
    %808 = sbr.rel (0) target = $region49
  $region48: #{_decoder_cell_forward.1} parent=0 // pred_region
    _
  $region49: #{_decoder_cell_forward.1} parent=0 // pred_fallthru
    _
  // Predicated region
  $region50: #{_decoder_cell_forward.1} parent=0 // pred_check
    _
  $region51: #{_decoder_cell_forward.1} parent=0 // pred_check_branch
    %810 = sbr.rel (0) target = $region53
  $region52: #{_decoder_cell_forward.1} parent=0 // pred_region
    _
  $region53: #{_decoder_cell_forward.1} parent=0 // pred_fallthru
    _

</llo_original>
